<compile_context>
chip_gen: v5e
topology: v5e:2x2
jax: 0.10.0
libtpu: 0.0.40
codegen_flags: <defaults>
</compile_context>

<pallas_src>
import functools

import jax
import jax.numpy as jnp
from jax import lax
from jax.experimental import pallas as pl
from jax.experimental.pallas import tpu as pltpu

SMOOTH = 1e-05
LANES = 128
TEMP_BYTES_PER_ELEM = 24   # live f32 intermediates per element (logits, tar, e, prob, prod)


def _dice_partial_kernel(p_ref, t_ref, *out_refs, multiple, fold,
                         rows_total, rows_per_block, ragged):
    """One grid step for one (batch n, row-block j).

    p_ref      : (1, C, T, 128) logits block
    t_ref      : (1, C, T, 128) target block (int8 permuted one-hot when multiple=True)
    out_refs[0]: (1, 1, T_out, 128) f32 partial intersection sums
    out_refs[1]: (1, 1, T_out, 128) f32 partial union sums (only when multiple=False)
    """
    logits = p_ref[...].astype(jnp.float32)
    tar = t_ref[...].astype(jnp.float32)

    if ragged:
        # Last row-block sticks out past R; Pallas pads the HBM->VMEM copy with
        # unspecified bytes (possibly NaN/Inf as f32) -> sanitize + zero those rows.
        j = pl.program_id(1)
        row = lax.broadcasted_iota(jnp.int32, (1, 1, rows_per_block, LANES), 2)
        valid = (j * rows_per_block + row) < rows_total            # (1,1,T,128)
        logits = jnp.where(valid, logits, 0.0)
        tar = jnp.where(valid, tar, 0.0)

    if multiple:
        m = jnp.max(logits, axis=1, keepdims=True)                 # (1,1,T,128)  VPU (C outer)
        e = jnp.exp(logits - m)                                    # EUP
        s = jnp.sum(e, axis=1, keepdims=True)                      # VPU
        # pl.reciprocal(s, approx=True) considered (review item) but kept exact for
        # 1e-5 parity; the kernel is HBM-bound so this narrow divide is hidden.
        prob = e * (1.0 / s)
    else:
        prob = jax.nn.sigmoid(logits)

    inter = jnp.sum(prob * tar, axis=(0, 1))                        # (T,128) VPU adds over C
    if fold:                                                        # fold rows to one (8,128) vreg
        inter = inter.reshape(rows_per_block // 8, 8, LANES).sum(axis=0)
    out_refs[0][...] = inter[None, None]

    if not multiple:
        union = prob + tar
        if ragged:
            union = jnp.where(valid, union, 0.0)                    # sigmoid(0)=0.5 in pad rows
        union = jnp.sum(union, axis=(0, 1))
        if fold:
            union = union.reshape(rows_per_block // 8, 8, LANES).sum(axis=0)
        out_refs[1][...] = union[None, None]


def _vmem_capacity_bytes():
    """Physical per-core VMEM; falls back to the smallest current generation (v7x)."""
    try:
        return int(pltpu.get_tpu_info().vmem_capacity_bytes)
    except Exception:
        return 64 * 1024 * 1024


def _choose_rows(R, max_rows, min_blocks=1):
    """Rows-per-block T.  T is a multiple of 32 (int8 sublane packing, f32-safe) or
    the full row extent R.  Ragged last blocks are allowed (masked in-kernel), so T
    does not have to divide R and no padding is ever needed."""
    ALIGN = 32
    cap = max(1, min(max_rows, -(-R // max(1, min_blocks))))
    if R <= cap:
        return R                               # single full-extent block (always legal)
    if cap >= ALIGN:
        return (cap // ALIGN) * ALIGN
    if cap >= 8:
        return (cap // 8) * 8                  # f32-aligned at least
    # Budget asks for < 8 rows (not a legal tile): fall back to full extent;
    # vmem_limit below is sized from the real footprint.
    return R


def dice_loss(predict, target, num_classes, multiple=True, vmem_budget_bytes=None):
    """Pallas DiceLoss forward.

    predict: (N, C, H, W) float logits (NCHW, like PyTorch)
    target : (N, H, W) int class ids    when multiple=True
             (N, C, H, W) float mask    when multiple=False
    """
    N, C, H, W = predict.shape
    HW = H * W
    if multiple:
        assert num_classes == C, "num_classes must equal predict.shape[1]"

    R = -(-HW // LANES)                        # ceil(HW / 128) rows of 128 lanes
    pad_hw = R * LANES - HW

    p3 = predict.reshape(N, C, HW)
    if multiple:
        # Quirk pairing: HWC-flat one-hot reinterpreted as (N, C, HW) — a free reshape.
        # int8 keeps its HBM read 4x below f32; cast to f32 in-kernel.
        t3 = jax.nn.one_hot(target.reshape(N, HW), num_classes,
                            dtype=jnp.int8).reshape(N, C, HW)
    else:
        t3 = target.reshape(N, C, HW)

    if pad_hw:
        # TODO(synk): a fully pad-free ragged-HW path needs a flat (N,C,HW) block
        # layout with lane masking; this copy only triggers when H*W % 128 != 0.
        p3 = jnp.pad(p3, ((0, 0), (0, 0), (0, pad_hw)))   # zero logits -> finite softmax/sigmoid
        t3 = jnp.pad(t3, ((0, 0), (0, 0), (0, pad_hw)))   # zero target -> intersection unaffected

    p4 = p3.reshape(N, C, R, LANES)            # free bitcast when pad_hw == 0
    t4 = t3.reshape(N, C, R, LANES)

    # ---- generation-aware tiling / VMEM limits --------------------------------
    cap_bytes = _vmem_capacity_bytes()
    if vmem_budget_bytes is None:
        vmem_budget_bytes = int(cap_bytes * 0.45)          # ~28 MiB v7x, ~57 MiB v5e/v6e

    p_bytes = jnp.dtype(predict.dtype).itemsize
    t_bytes = jnp.dtype(t4.dtype).itemsize
    # double-buffered inputs + in-kernel f32 temporaries, per 128-lane row of all C channels
    per_row = C * LANES * (2 * (p_bytes + t_bytes) + TEMP_BYTES_PER_ELEM)
    max_rows = max(1, vmem_budget_bytes // per_row)

    T = _choose_rows(R, max_rows, min_blocks=1 if N >= 2 else 2)
    Gj = -(-R // T)
    ragged = (R % T) != 0
    fold = (T % 8 == 0) and (T > 8)
    T_out = 8 if fold else T
    n_out = 1 if multiple else 2

    footprint = per_row * T + 2 * n_out * T_out * LANES * 4 + (1 << 20)
    vmem_limit = int(min(cap_bytes * 0.85,
                         max(footprint * 3 // 2, 16 * 1024 * 1024)))

    kernel = functools.partial(_dice_partial_kernel, multiple=multiple, fold=fold,
                               rows_total=R, rows_per_block=T, ragged=ragged)

    out_shapes = tuple(jax.ShapeDtypeStruct((N, Gj, T_out, LANES), jnp.float32)
                       for _ in range(n_out))
    out_specs = [pl.BlockSpec((1, 1, T_out, LANES), lambda n, j: (n, j, 0, 0))
                 for _ in range(n_out)]

    results = pl.pallas_call(
        kernel,
        out_shape=out_shapes,
        grid_spec=pltpu.PrefetchScalarGridSpec(
            num_scalar_prefetch=0,
            grid=(N, Gj),
            in_specs=[
                pl.BlockSpec((1, C, T, LANES), lambda n, j: (n, 0, j, 0)),
                pl.BlockSpec((1, C, T, LANES), lambda n, j: (n, 0, j, 0)),
            ],
            out_specs=out_specs,
        ),
        compiler_params=pltpu.CompilerParams(
            dimension_semantics=("parallel", "parallel"),
            vmem_limit_bytes=vmem_limit,
        ),
    )(p4, t4)

    intersection = jnp.sum(results[0], dtype=jnp.float32)
    if multiple:
        # sum_c softmax == 1 per pixel and the one-hot sums to 1 per pixel, so the
        # union is exactly 2*N*HW (reference differs only by fp summation order).
        union_total = jnp.float32(2 * N * HW)
    else:
        union_total = jnp.sum(results[1], dtype=jnp.float32)
        if pad_hw:
            union_total = union_total - jnp.float32(0.5 * N * C * pad_hw)  # sigmoid(0) at pad
    return (1.0 - (2.0 * intersection + SMOOTH) / (union_total + SMOOTH)).astype(jnp.float32)


def dice_loss_ref(predict, target, num_classes, multiple=True):
    """Pure-JAX reference mirroring the PyTorch module (including its view-order quirk)."""
    N = predict.shape[0]
    if multiple:
        pre = jax.nn.softmax(predict, axis=1)
        tar = jax.nn.one_hot(target, num_classes, dtype=jnp.float32)
    else:
        pre = jax.nn.sigmoid(predict)
        tar = target.astype(jnp.float32)
    pre = pre.reshape(N, -1)
    tar = tar.reshape(N, -1)
    intersection = jnp.sum(pre * tar)
    union = jnp.sum(pre + tar)
    return 1.0 - (2.0 * intersection + SMOOTH) / (union + SMOOTH)


if __name__ == "__main__":
    key = jax.random.PRNGKey(0)
    k1, k2, k3 = jax.random.split(key, 3)

    N, C, H, W = 2, 4, 16, 16

    # multiple=True (the reachable branch of the PyTorch module)
    predict = jax.random.normal(k1, (N, C, H, W), dtype=jnp.float32)
    target = jax.random.randint(k2, (N, H, W), 0, C, dtype=jnp.int32)
    score = jax.block_until_ready(dice_loss(predict, target, num_classes=C, multiple=True))
    ref = dice_loss_ref(predict, target, C, multiple=True)
    assert jnp.allclose(score, ref, atol=1e-5, rtol=1e-5), (score, ref)

    # multiple=False (sigmoid variant)
    mask = jax.random.bernoulli(k3, 0.3, (N, C, H, W)).astype(jnp.float32)
    score_b = jax.block_until_ready(dice_loss(predict, mask, num_classes=C, multiple=False))
    ref_b = dice_loss_ref(predict, mask, C, multiple=False)
    assert jnp.allclose(score_b, ref_b, atol=1e-5, rtol=1e-5), (score_b, ref_b)

    print("KERNEL_OK")
</pallas_src>

<mosaic_0001>
module attributes {stable_mosaic.version = 11 : i64} {
  func.func @_dice_partial_kernel(%arg0: i32, %arg1: i32, %arg2: memref<1x4x2x128xf32, #tpu.memory_space<vmem>>, %arg3: memref<1x4x2x128xi8, #tpu.memory_space<vmem>>, %arg4: memref<1x1x2x128xf32, #tpu.memory_space<vmem>>) attributes {dimension_semantics = [#tpu.dimension_semantics<parallel>, #tpu.dimension_semantics<parallel>], iteration_bounds = array<i64: 2, 1>, scalar_prefetch = 0 : i64, scratch_operands = 0 : i64, tpu.core_type = #tpu.core_type<tc>, window_params = [{transform_indices = @transform_0, window_bounds = array<i64: 1, 4, 2, 128>}, {transform_indices = @transform_1, window_bounds = array<i64: 1, 4, 2, 128>}, {transform_indices = @transform_2, window_bounds = array<i64: 1, 1, 2, 128>}]} {
    %c0 = arith.constant 0 : index
    %c0_0 = arith.constant 0 : index
    %c0_1 = arith.constant 0 : index
    %c0_2 = arith.constant 0 : index
    %0 = vector.load %arg2[%c0, %c0_0, %c0_1, %c0_2] : memref<1x4x2x128xf32, #tpu.memory_space<vmem>>, vector<1x4x2x128xf32>
    %c0_3 = arith.constant 0 : index
    %c0_4 = arith.constant 0 : index
    %c0_5 = arith.constant 0 : index
    %c0_6 = arith.constant 0 : index
    %1 = vector.load %arg3[%c0_3, %c0_4, %c0_5, %c0_6] : memref<1x4x2x128xi8, #tpu.memory_space<vmem>>, vector<1x4x2x128xi8>
    %2 = arith.sitofp %1 : vector<1x4x2x128xi8> to vector<1x4x2x128xf32>
    %cst = arith.constant dense<0xFF800000> : vector<1x2x128xf32>
    %3 = vector.multi_reduction <maximumf>, %0, %cst [1] : vector<1x4x2x128xf32> to vector<1x2x128xf32>
    %4 = vector.shape_cast %3 : vector<1x2x128xf32> to vector<1x1x2x128xf32>
    %5 = vector.broadcast %4 : vector<1x1x2x128xf32> to vector<1x4x2x128xf32>
    %6 = arith.subf %0, %5 : vector<1x4x2x128xf32>
    %7 = math.exp %6 : vector<1x4x2x128xf32>
    %cst_7 = arith.constant dense<0.000000e+00> : vector<1x2x128xf32>
    %8 = vector.multi_reduction <add>, %7, %cst_7 [1] : vector<1x4x2x128xf32> to vector<1x2x128xf32>
    %9 = vector.shape_cast %8 : vector<1x2x128xf32> to vector<1x1x2x128xf32>
    %cst_8 = arith.constant 1.000000e+00 : f32
    %10 = vector.broadcast %cst_8 : f32 to vector<1x1x2x128xf32>
    %11 = arith.divf %10, %9 : vector<1x1x2x128xf32>
    %12 = vector.broadcast %11 : vector<1x1x2x128xf32> to vector<1x4x2x128xf32>
    %13 = arith.mulf %7, %12 : vector<1x4x2x128xf32>
    %14 = arith.mulf %13, %2 : vector<1x4x2x128xf32>
    %cst_9 = arith.constant dense<0.000000e+00> : vector<2x128xf32>
    %15 = vector.multi_reduction <add>, %14, %cst_9 [0, 1] : vector<1x4x2x128xf32> to vector<2x128xf32>
    %16 = vector.shape_cast %15 : vector<2x128xf32> to vector<1x1x2x128xf32>
    %c0_10 = arith.constant 0 : index
    %c0_11 = arith.constant 0 : index
    %c0_12 = arith.constant 0 : index
    %c0_13 = arith.constant 0 : index
    %17 = vector.load %arg4[%c0_10, %c0_11, %c0_12, %c0_13] : memref<1x1x2x128xf32, #tpu.memory_space<vmem>>, vector<1x1x2x128xf32>
    tpu.vector_store %arg4[%c0_10, %c0_11, %c0_12, %c0_13], %16 {strides = array<i32>} : memref<1x1x2x128xf32, #tpu.memory_space<vmem>>, vector<1x1x2x128xf32>,
    return
  }
  func.func @transform_0(%arg0: i32, %arg1: i32) -> (i32, i32, i32, i32) {
    %c0_i32 = arith.constant 0 : i32
    %c0_i32_0 = arith.constant 0 : i32
    %c0_i32_1 = arith.constant 0 : i32
    return %arg0, %c0_i32, %arg1, %c0_i32_0 : i32, i32, i32, i32
  }
  func.func @transform_1(%arg0: i32, %arg1: i32) -> (i32, i32, i32, i32) {
    %c0_i32 = arith.constant 0 : i32
    %c0_i32_0 = arith.constant 0 : i32
    %c0_i32_1 = arith.constant 0 : i32
    return %arg0, %c0_i32, %arg1, %c0_i32_0 : i32, i32, i32, i32
  }
  func.func @transform_2(%arg0: i32, %arg1: i32) -> (i32, i32, i32, i32) {
    %c0_i32 = arith.constant 0 : i32
    %c0_i32_0 = arith.constant 0 : i32
    %c0_i32_1 = arith.constant 0 : i32
    return %arg0, %arg1, %c0_i32, %c0_i32_0 : i32, i32, i32, i32
  }
}

</mosaic_0001>

<llo_original>
// kernel: tpu_custom_call.1
$region0: #{tpu_custom_call.1}
  #allocation0 [shape = 'u32[]', space=smem, size = 0x4, offset = 0x4, fixed_abs, tag = 'smem constant byte address 0x4 - core index']
  #allocation1 [shape = 'u32[72,128]{1,0:T(1,128)}', space=vmem, size = 0x9000, scoped, tag = 'internal scratch']
  %s0 = inlined_call_operand.hbm [shape: f32[2,4,2,128], index: 0, kind: input, shape index: {}]
  %s1 = inlined_call_operand.vmem [shape: s8[2,4,2,128], index: 1, kind: input, shape index: {}]
  %s2 = inlined_call_operand.hbm [shape: f32[2,1,2,128], index: 2, kind: output, shape index: {}]
  %s3 = sld [smem:[#allocation0]]
  $region45: #{tpu_custom_call.1} parent=0
    _
  %s5 = ssub.s32 1, %s3
  %s6 = scalar_select 0, %s5, %s3
  $region1: #{tpu_custom_call.1} parent=0
    #allocation2 [shape = 'u8[8192]{0}', space=vmem, size = 0x2000, scoped, tag = 'input window, operand 0']
    #allocation3 [shape = 's32[2]{0}', space=sflag, size = 0x8, scoped, tag = 'scoped memory for tpu_custom_call.1']
    #allocation4 [shape = 's32[2]{0}', space=sflag, size = 0x8, scoped, tag = 'scoped memory for tpu_custom_call.1']
    #allocation5 [shape = 'u8[2048]{0}', space=vmem, size = 0x800, scoped, tag = 'output window, operand 0']
    %7 = vsyncpa [#allocation3], 0
    %s8 = scalar_lea.sflag [#allocation3], 1
    %9 = vsyncpa %s8, 0
    %10 = vsyncpa [#allocation4], 0
    %s11 = scalar_lea.sflag [#allocation4], 1
    %12 = vsyncpa %s11, 0
    loop: start=0, step=1, limit=4
    $region2: #{tpu_custom_call.1} parent=1 // loop_pre_header
      _
    $region3: #{tpu_custom_call.1} parent=1 // loop_header
      %s14 = sphi 0, %s18
      %p15 = scmp.ge.s32.totalorder %s14, 4
      %s21 = sphi 0, %s33
      %s22 = sphi 0, %s29
      %s23 = sphi 0, %s21
      %s24 = sphi 0, %s22
      %s25 = sphi 0, %s23
      %s26 = sphi 0, %s24
      %s38 = sphi 0, %s40
      %s41 = sphi 0, %s38
      %s42 = sphi 0, %s41
      %s58 = sphi 0, %s42
      %s66 = sphi 0, %s68
      %s69 = sphi 0, %s66
      %s70 = sphi 0, %s69
      %s86 = sphi 0, %s70
      %s94 = sphi 0, %s96
      %s97 = sphi 0, %s94
      %s98 = sphi 0, %s97
      %s114 = sphi 0, %s98
    $region4: #{tpu_custom_call.1} parent=1 // loop_header_branch
      %17 = sbr.rel (%p15) target = $region8
    $region5: #{tpu_custom_call.1} parent=1 // loop_body
      %s19 = ssub.s32 %s14, 1
      %s20 = ssub.s32 %s14, 2
      %s27 = sadd.s32 1, %s22
      %p28 = scmp.ge.s32.totalorder %s27, 1
      %s29 = scalar_select %p28, 0, %s27
      %s30 = sadd.s32 1, %s21
      %s31 = scalar_select %p28, %s30, %s21
      %p32 = scmp.ge.s32.totalorder %s31, 2
      %s33 = scalar_select %p32, 0, %s31
      %s34 = ssub.s32 %s21, %s33
      %s35 = ssub.s32 %s22, %s29
      %s36 = sor.u32 %s34, %s35
      %p37 = scmp.eq.s32.totalorder %s36, 0
      %s39 = sadd.s32 %s38, 1
      %s40 = scalar_select %p37, %s38, %s39
      %p43 = pneg %p37
      %p44 = scmp.eq.s32.totalorder %s14, 1
      %p45 = por %p43, %p44
      %p46 = scmp.ne.s32.totalorder %s38, %s41
      %p47 = scmp.eq.s32.totalorder %s14, 0
      %p48 = por %p46, %p47
      %p49 = scmp.ne.s32.totalorder %s38, %s41
      %p50 = scmp.eq.s32.totalorder %s19, 1
      %p51 = por %p49, %p50
      %p52 = scmp.ne.s32.totalorder %s41, %s42
      %p53 = scmp.eq.s32.totalorder %s19, 0
      %p54 = por %p52, %p53
      %p55 = scmp.ne.s32.totalorder %s41, %s42
      %p56 = scmp.eq.s32.totalorder %s20, 1
      %p57 = por %p55, %p56
      %p59 = scmp.ne.s32.totalorder %s42, %s58
      %p60 = scmp.eq.s32.totalorder %s20, 0
      %p61 = por %p59, %p60
      %s62 = ssub.s32 %s21, %s33
      %s63 = ssub.s32 %s22, %s29
      %s64 = sor.u32 %s62, %s63
      %p65 = scmp.eq.s32.totalorder %s64, 0
      %s67 = sadd.s32 %s66, 1
      %s68 = scalar_select %p65, %s66, %s67
      %p71 = pneg %p65
      %p72 = scmp.eq.s32.totalorder %s14, 1
      %p73 = por %p71, %p72
      %p74 = scmp.ne.s32.totalorder %s66, %s69
      %p75 = scmp.eq.s32.totalorder %s14, 0
      %p76 = por %p74, %p75
      %p77 = scmp.ne.s32.totalorder %s66, %s69
      %p78 = scmp.eq.s32.totalorder %s19, 1
      %p79 = por %p77, %p78
      %p80 = scmp.ne.s32.totalorder %s69, %s70
      %p81 = scmp.eq.s32.totalorder %s19, 0
      %p82 = por %p80, %p81
      %p83 = scmp.ne.s32.totalorder %s69, %s70
      %p84 = scmp.eq.s32.totalorder %s20, 1
      %p85 = por %p83, %p84
      %p87 = scmp.ne.s32.totalorder %s70, %s86
      %p88 = scmp.eq.s32.totalorder %s20, 0
      %p89 = por %p87, %p88
      %s90 = ssub.s32 %s21, %s33
      %s91 = ssub.s32 %s22, %s29
      %s92 = sor.u32 %s90, %s91
      %p93 = scmp.eq.s32.totalorder %s92, 0
      %s95 = sadd.s32 %s94, 1
      %s96 = scalar_select %p93, %s94, %s95
      %p99 = pneg %p93
      %p100 = scmp.eq.s32.totalorder %s14, 1
      %p101 = por %p99, %p100
      %p102 = scmp.ne.s32.totalorder %s94, %s97
      %p103 = scmp.eq.s32.totalorder %s14, 0
      %p104 = por %p102, %p103
      %p105 = scmp.ne.s32.totalorder %s94, %s97
      %p106 = scmp.eq.s32.totalorder %s19, 1
      %p107 = por %p105, %p106
      %p108 = scmp.ne.s32.totalorder %s97, %s98
      %p109 = scmp.eq.s32.totalorder %s19, 0
      %p110 = por %p108, %p109
      %p111 = scmp.ne.s32.totalorder %s97, %s98
      %p112 = scmp.eq.s32.totalorder %s20, 1
      %p113 = por %p111, %p112
      %p115 = scmp.ne.s32.totalorder %s98, %s114
      %p116 = scmp.eq.s32.totalorder %s20, 0
      %p117 = por %p115, %p116
      %p118 = scmp.le.s32.totalorder 1, %s14
      %p119 = scmp.lt.s32.totalorder %s14, 3
      %p120 = pnand %p118, %p119
      %p121 = pneg %p120
      // Predicated region
      $region9: #{tpu_custom_call.1} parent=5 // pred_check
        _
      $region10: #{tpu_custom_call.1} parent=5 // pred_check_branch
        %123 = sbr.rel (%p120) target = $region12
      $region11: #{tpu_custom_call.1} parent=5 // pred_region
        %s124 = ssub.s32 %s14, 1
      $region12: #{tpu_custom_call.1} parent=5 // pred_fallthru
        _
      %p125 = scmp.lt.s32.totalorder %s14, 2
      // Predicated region
      $region13: #{tpu_custom_call.1} parent=5 // pred_check
        %p126 = pneg %p125
      $region14: #{tpu_custom_call.1} parent=5 // pred_check_branch
        %128 = sbr.rel (%p126) target = $region16
      $region15: #{tpu_custom_call.1} parent=5 // pred_region
        // Predicated region
        $region17: #{tpu_custom_call.1} parent=15 // pred_check
          %p129 = pneg %p48
        $region18: #{tpu_custom_call.1} parent=15 // pred_check_branch
          %131 = sbr.rel (%p129) target = $region20
        $region19: #{tpu_custom_call.1} parent=15 // pred_region
          %s132 = sand.u32 %s38, 1
          %s133 = scalar_lea.sflag [#allocation3], %s132
          %s134 = sand.u32 %s38, 1
          %s135 = smul.addr %s134, 8
          %s136 = scalar_lea.vmem [#allocation2], %s135
          %138 = vsyncadd %s133, 0
          %s139 = smul.addr %s21, 4
          %s140 = sadd.s32 %s22, %s139
          %s141 = smul.addr %s140, 2
          %s142 = scalar_lea.hbm %s0, %s141
          %s143 = sshll.u32 %s142, 4
          %s144 = int_to_ptr.hbm [resolvable:$true] %s143
          %s145 = sshll.u32 %s136, 4
          %s146 = int_to_ptr.vmem [resolvable:$true] %s145
          %151 = dma.hbm_to_vmem [thread:$0]  %s144, 128, %s146, %s133, 32, 32, 2
        $region20: #{tpu_custom_call.1} parent=15 // pred_fallthru
          _
        // Predicated region
        $region21: #{tpu_custom_call.1} parent=15 // pred_check
          %p152 = pneg %p76
        $region22: #{tpu_custom_call.1} parent=15 // pred_check_branch
          %154 = sbr.rel (%p152) target = $region24
        $region23: #{tpu_custom_call.1} parent=15 // pred_region
          %p155 = scmp.lt.s32.totalorder %s21, 1
          %s156 = scalar_select %p155, %s21, 1
          %p157 = scmp.lt.s32.totalorder %s22, 0
          %s158 = scalar_select %p157, %s22, 0
          %s159 = smul.addr %s156, 4
          %s160 = sadd.s32 %s158, %s159
          %s161 = scalar_lea.vmem %s1, %s160
        $region24: #{tpu_custom_call.1} parent=15 // pred_fallthru
          _
      $region16: #{tpu_custom_call.1} parent=5 // pred_fallthru
        _
      %p162 = scmp.le.s32.totalorder 1, %s14
      %p163 = scmp.lt.s32.totalorder %s14, 3
      %p164 = pnand %p162, %p163
      %p165 = pneg %p164
      // Predicated region
      $region25: #{tpu_custom_call.1} parent=5 // pred_check
        _
      $region26: #{tpu_custom_call.1} parent=5 // pred_check_branch
        %167 = sbr.rel (%p164) target = $region28
      $region27: #{tpu_custom_call.1} parent=5 // pred_region
        %s168 = ssub.s32 %s14, 1
        %s169 = sand.u32 %s41, 1
        %s170 = scalar_lea.sflag [#allocation3], %s169
        %s171 = sand.u32 %s41, 1
        %s172 = smul.addr %s171, 8
        %s173 = scalar_lea.vmem [#allocation2], %s172
        // Predicated region
        $region29: #{tpu_custom_call.1} parent=27 // pred_check
          %p174 = pneg %p54
        $region30: #{tpu_custom_call.1} parent=27 // pred_check_branch
          %176 = sbr.rel (%p174) target = $region32
        $region31: #{tpu_custom_call.1} parent=27 // pred_region
          %178 = dma.done %s170, 128
        $region32: #{tpu_custom_call.1} parent=27 // pred_fallthru
          _
        %s179 = sand.u32 %s41, 1
        %s180 = scalar_lea.sflag [#allocation3], %s179
        %s181 = sand.u32 %s41, 1
        %s182 = smul.addr %s181, 8
        %s183 = scalar_lea.vmem [#allocation2], %s182
        %p184 = pneg %p54
        %p185 = pneg %p51
        %p186 = scmp.lt.s32.totalorder %s23, 1
        %s187 = scalar_select %p186, %s23, 1
        %p188 = scmp.lt.s32.totalorder %s24, 0
        %s189 = scalar_select %p188, %s24, 0
        %s190 = smul.addr %s187, 4
        %s191 = sadd.s32 %s189, %s190
        %s192 = scalar_lea.vmem %s1, %s191
        %p193 = pneg %p82
        %p194 = pneg %p79
        %p195 = pneg %p110
        %p196 = pneg %p107
        %s197 = sand.u32 %s97, 1
        %s198 = scalar_lea.sflag [#allocation4], %s197
        %s199 = sand.u32 %s97, 1
        %s200 = smul.addr %s199, 2
        %s201 = scalar_lea.vmem [#allocation5], %s200
        %p202 = scmp.lt.s32.totalorder %s23, 1
        %s203 = scalar_select %p202, %s23, 1
        %p204 = scmp.lt.s32.totalorder %s24, 0
        %s205 = scalar_select %p204, %s24, 0
        %s206 = smul.addr %s203, 4
        %s207 = sadd.s32 %s205, %s206
        %s208 = scalar_lea.vmem %s1, %s207
        %v209 = vld [vmem:[%s173] sm:$0x3]
        %v210 = vld [vmem:[%s173 + $0x2] sm:$0x3]
        %v211 = vld [vmem:[%s173 + $0x4] sm:$0x3]
        %v212 = vld [vmem:[%s173 + $0x6] sm:$0x3]
        %v213 = vld [vmem:[%s208] sm:$0x1]
        %v214 = vld [vmem:[%s208 + $0x1] sm:$0x1]
        %v215 = vld [vmem:[%s208 + $0x2] sm:$0x1]
        %v216 = vld [vmem:[%s208 + $0x3] sm:$0x1]
        %v217 = vunpack.c.0.s8 %v213
        %v218 = vunpack.c.0.s8 %v214
        %v219 = vunpack.c.0.s8 %v215
        %v220 = vunpack.c.0.s8 %v216
        %v221 = vcvt.s32.f32 %v217
        %v222 = vcvt.s32.f32 %v218
        %v223 = vcvt.s32.f32 %v219
        %v224 = vcvt.s32.f32 %v220
        %vm225 = vcmask 1041408
        %v226 = vsel %vm225, %v209, -inf
        %v227 = vsel %vm225, %v210, -inf
        %v228 = vsel %vm225, %v211, -inf
        %v229 = vsel %vm225, %v212, -inf
        %v230 = vmax.f32 %v226, %v227
        %v231 = vmax.f32 %v228, %v229
        %v232 = vmax.f32 %v230, %v231
        %v233 = vsub.f32 %v209, %v232
        %v234 = vsub.f32 %v210, %v232
        %v235 = vsub.f32 %v211, %v232
        %v236 = vsub.f32 %v212, %v232
        %v237 = vmul.f32 %v233, 1.442695
        %v238 = vpow.pop %v237
        %v239 = vmul.f32 %v234, 1.442695
        %v240 = vpow.pop %v239
        %v241 = vmul.f32 %v235, 1.442695
        %v242 = vpow.pop %v241
        %v243 = vmul.f32 %v236, 1.442695
        %v244 = vpow.pop %v243
        %v245 = vsel %vm225, %v238, 0.0
        %v246 = vsel %vm225, %v240, 0.0
        %v247 = vadd.f32 %v245, %v246
        %v248 = vsel %vm225, %v242, 0.0
        %v249 = vadd.f32 %v247, %v248
        %v250 = vsel %vm225, %v244, 0.0
        %v251 = vadd.f32 %v249, %v250
        %v252 = vrcp.pop %v251
        %v253 = vmul.f32 %v251, %v252
        %v254 = vsub.f32 1.0, %v253
        %v255 = vmul.f32 %v252, %v254
        %v256 = vadd.f32 %v252, %v255
        %vm257 = vweird.f32 %v251
        %vm258 = vweird.f32 %v252
        %vm259 = vmor %vm257, %vm258
        %v260 = vsel %vm259, %v252, %v256
        %v261 = vand.u32 2147483647, %v251
        %vm262 = vcmp.eq.f32.partialorder %v261, 8.507059e+37
        %v263 = vand.u32 %v251, 2147483648
        %v264 = vor.u32 1.1754944e-38, %v263
        %v265 = vsel %vm262, %v264, %v260
        %v266 = vmul.f32 1.0, %v265
        %v267 = vmul.f32 %v238, %v266
        %v268 = vmul.f32 %v240, %v266
        %v269 = vmul.f32 %v242, %v266
        %v270 = vmul.f32 %v244, %v266
        %v271 = vmul.f32 %v267, %v221
        %v272 = vmul.f32 %v268, %v222
        %v273 = vmul.f32 %v269, %v223
        %v274 = vmul.f32 %v270, %v224
        %v275 = vsel %vm225, %v271, 0.0
        %v276 = vsel %vm225, %v272, 0.0
        %v277 = vadd.f32 %v275, %v276
        %v278 = vsel %vm225, %v273, 0.0
        %v279 = vadd.f32 %v277, %v278
        %v280 = vsel %vm225, %v274, 0.0
        %v281 = vadd.f32 %v279, %v280
        %282 = vst [vmem:[%s201] sm:$0x3] %v281
        %s283 = sand.u32 %s97, 1
        %s284 = scalar_lea.sflag [#allocation4], %s283
        %s285 = sand.u32 %s97, 1
        %s286 = smul.addr %s285, 2
        %s287 = scalar_lea.vmem [#allocation5], %s286
        // Predicated region
        $region33: #{tpu_custom_call.1} parent=27 // pred_check
          %p288 = pneg %p107
        $region34: #{tpu_custom_call.1} parent=27 // pred_check_branch
          %290 = sbr.rel (%p288) target = $region36
        $region35: #{tpu_custom_call.1} parent=27 // pred_region
          %292 = vsyncadd %s284, 0
          %s293 = sadd.s32 %s24, %s23
          %s294 = smul.addr %s293, 2
          %s295 = scalar_lea.hbm %s2, %s294
          %s297 = sshll.u32 %s287, 4
          %s298 = int_to_ptr.vmem [resolvable:$true] %s297
          %s299 = sshll.u32 %s295, 4
          %s300 = int_to_ptr.hbm [resolvable:$true] %s299
          %302 = dma.vmem_to_hbm [thread:$0]  %s298, 32, %s300, %s284
        $region36: #{tpu_custom_call.1} parent=27 // pred_fallthru
          _
      $region28: #{tpu_custom_call.1} parent=5 // pred_fallthru
        _
      %p303 = scmp.le.s32.totalorder 2, %s14
      // Predicated region
      $region37: #{tpu_custom_call.1} parent=5 // pred_check
        %p304 = pneg %p303
      $region38: #{tpu_custom_call.1} parent=5 // pred_check_branch
        %306 = sbr.rel (%p304) target = $region40
      $region39: #{tpu_custom_call.1} parent=5 // pred_region
        %s307 = ssub.s32 %s14, 2
        // Predicated region
        $region41: #{tpu_custom_call.1} parent=39 // pred_check
          %p308 = pneg %p113
        $region42: #{tpu_custom_call.1} parent=39 // pred_check_branch
          %310 = sbr.rel (%p308) target = $region44
        $region43: #{tpu_custom_call.1} parent=39 // pred_region
          %s311 = sand.u32 %s98, 1
          %s312 = scalar_lea.sflag [#allocation4], %s311
          %s313 = sand.u32 %s98, 1
          %s314 = smul.addr %s313, 2
          %s315 = scalar_lea.vmem [#allocation5], %s314
          %317 = dma.done %s312, 32
        $region44: #{tpu_custom_call.1} parent=39 // pred_fallthru
          _
      $region40: #{tpu_custom_call.1} parent=5 // pred_fallthru
        _
    $region6: #{tpu_custom_call.1} parent=1 // loop_footer
      %s18 = sadd.s32 1, %s14
    $region7: #{tpu_custom_call.1} parent=1 // loop_footer_branch
      %13 = sbr.rel target = $region3
    $region8: #{tpu_custom_call.1} parent=1 // loop_exit
      _
    %318 = vsyncpa [#allocation3], 1
    %s319 = scalar_lea.sflag [#allocation3], 1
    %320 = vsyncpa %s319, 1
    %321 = vsyncpa [#allocation4], 1
    %s322 = scalar_lea.sflag [#allocation4], 1
    %323 = vsyncpa %s322, 1

</llo_original>
